<compile_context>
chip_gen: v7x
topology: tpu7x:2x2x1
jax: 0.10.0
libtpu: 0.0.40
codegen_flags: <defaults>
</compile_context>

<pallas_src>
import functools

import jax
import jax.numpy as jnp
from jax.experimental import pallas as pl
from jax.experimental.pallas import tpu as pltpu

BLOCK_SIZE = 32   # max sequence length (matches `block_size` in the module)
MODEL_DIM = 64    # matches `model_dim`
HEAD_SIZE = 16
WINDOW_SIZE = 8


def _attn_kernel(x_ref, w_ref, bias_ref, out_ref, attn_ref, *, batch, seq, head_size):
    """Single grid step, all batch elements in one block-diagonal pass.

    x_ref    : (B*T, C)     VMEM f32 (rows of all batches stacked)
    w_ref    : (C, 3H)      VMEM bf16 fused [scale*Wq^T | Wk^T | Wv^T]
    bias_ref : (B*T, B*T)   VMEM f32 additive mask (0 allowed / big-neg masked,
                            block-diagonal: cross-batch entries masked too)
    out_ref  : (B*T, H)     VMEM f32
    attn_ref : (B*T, T)     VMEM f32 (diagonal blocks of the softmax slab)
    """
    B, T, H = batch, seq, head_size

    # Fused QKV projection: one MXU matmul over all batch rows, f32 accumulate.
    x = x_ref[...].astype(jnp.bfloat16)                       # (B*T, C)
    qkv = jnp.dot(x, w_ref[...], preferred_element_type=jnp.float32)
    qkv = qkv.astype(jnp.bfloat16)                             # (B*T, 3H)
    q = qkv[:, 0 * H:1 * H]                                    # (B*T, H) scaled
    k = qkv[:, 1 * H:2 * H]                                    # (B*T, H)
    v = qkv[:, 2 * H:3 * H]                                    # (B*T, H)

    # Batched scores as one MXU matmul; scale already folded into Wq.
    s = jax.lax.dot_general(q, k, (((1,), (1,)), ((), ())),
                            preferred_element_type=jnp.float32)  # (B*T, B*T)
    s = s + bias_ref[...]

    # Numerically stable softmax, kept in f32 on the VPU.  Masked (incl.
    # cross-batch) entries underflow to exactly 0, so row sums only see the
    # within-batch local window.
    m = jnp.max(s, axis=-1, keepdims=True)
    e = jnp.exp(s - m)
    denom = jnp.sum(e, axis=-1, keepdims=True)
    p = e / denom                                              # (B*T, B*T) f32

    # Attention weights output: diagonal (T, T) blocks, one contiguous store.
    attn_ref[...] = jnp.concatenate(
        [p[b * T:(b + 1) * T, b * T:(b + 1) * T] for b in range(B)], axis=0)

    # Dropout == identity (eval mode).  Block-diagonal p zeroes cross-batch
    # contributions, so a single AV matmul gives every batch's output.
    out_ref[...] = jnp.dot(p.astype(jnp.bfloat16), v,
                           preferred_element_type=jnp.float32)


def prepare_qkv_weight(wq, wk, wv):
    """One-time weight prep (call at model init, NOT per forward).

    wq/wk/wv: (H, C) PyTorch nn.Linear weight layout.
    Returns fused (C, 3H) bf16 weight with the 1/sqrt(H) softmax scale folded
    into the Wq columns.
    """
    H = wq.shape[0]
    scale = jnp.float32(H) ** -0.5
    return jnp.concatenate([(wq * scale).T, wk.T, wv.T], axis=1).astype(jnp.bfloat16)


@functools.partial(jax.jit, static_argnames=("window_size",))
def local_window_masked_head(x, w_qkv, window_size=WINDOW_SIZE):
    """x: (B, T, C) float32.  w_qkv: (C, 3H) bf16 from prepare_qkv_weight.

    Returns (output (B,T,H) f32, attention_weights (B,T,T) f32).
    """
    B, T, C = x.shape
    H = w_qkv.shape[1] // 3

    # Free reshape; bf16 cast happens inside the kernel (drops one per-call op).
    x2d = x.reshape(B * T, C)

    # Additive block-diagonal local-window + causal mask bias, (B*T, B*T).
    # 0 where allowed, large finite negative where masked (exp underflows to
    # exactly 0 -> no -inf/NaN).  Constant-folded under jit (static shapes).
    i = jnp.arange(T)[:, None]
    j = jnp.arange(T)[None, :]
    allowed = (j <= i) & (j >= i - (window_size - 1))            # (T, T)
    neg = jnp.float32(jnp.finfo(jnp.float32).min / 2)
    bias_tt = jnp.where(allowed, jnp.float32(0.0), neg)          # (T, T)
    same_batch = jnp.eye(B, dtype=jnp.bool_)[:, None, :, None]   # (B,1,B,1)
    bias = jnp.where(same_batch, bias_tt[None, :, None, :], neg)  # (B,T,B,T)
    bias = bias.reshape(B * T, B * T)

    kernel = functools.partial(_attn_kernel, batch=B, seq=T, head_size=H)

    out_flat, attn_flat = pl.pallas_call(
        kernel,
        out_shape=(
            jax.ShapeDtypeStruct((B * T, H), jnp.float32),
            jax.ShapeDtypeStruct((B * T, T), jnp.float32),
        ),
        grid_spec=pltpu.PrefetchScalarGridSpec(
            num_scalar_prefetch=0,
            grid=(1,),   # whole problem (~40 KiB) fits trivially in VMEM
            in_specs=[
                pl.BlockSpec((B * T, C), lambda i: (0, 0)),
                pl.BlockSpec((C, 3 * H), lambda i: (0, 0)),
                pl.BlockSpec((B * T, B * T), lambda i: (0, 0)),
            ],
            out_specs=[
                pl.BlockSpec((B * T, H), lambda i: (0, 0)),
                pl.BlockSpec((B * T, T), lambda i: (0, 0)),
            ],
        ),
        compiler_params=pltpu.CompilerParams(
            dimension_semantics=("arbitrary",),
        ),
    )(x2d, w_qkv, bias)

    return out_flat.reshape(B, T, H), attn_flat.reshape(B, T, T)


def _reference(x, wq, wk, wv, window_size):
    """Pure-JAX f32 reference mirroring the PyTorch forward (eval mode)."""
    q = x @ wq.T
    k = x @ wk.T
    v = x @ wv.T
    T = x.shape[1]
    scores = (q @ jnp.swapaxes(k, -2, -1)) * (k.shape[-1] ** -0.5)
    i = jnp.arange(T)[:, None]
    j = jnp.arange(T)[None, :]
    allowed = (j <= i) & (j >= i - (window_size - 1))
    scores = jnp.where(allowed[None], scores, -jnp.inf)
    attn = jax.nn.softmax(scores, axis=-1)
    return attn @ v, attn


if __name__ == "__main__":
    key = jax.random.PRNGKey(0)
    kx, kq, kk, kv = jax.random.split(key, 4)

    B, T, C, H = 2, BLOCK_SIZE, MODEL_DIM, HEAD_SIZE
    assert WINDOW_SIZE >= 1, "window_size must be >= 1 (else rows are fully masked)"

    x = jax.random.normal(kx, (B, T, C), dtype=jnp.float32)

    # Deterministic "nn.Linear(model_dim, head_size, bias=False)" weights,
    # PyTorch weight layout (head_size, model_dim).
    bound = 1.0 / (C ** 0.5)
    wq = jax.random.uniform(kq, (H, C), jnp.float32, -bound, bound)
    wk = jax.random.uniform(kk, (H, C), jnp.float32, -bound, bound)
    wv = jax.random.uniform(kv, (H, C), jnp.float32, -bound, bound)

    # One-time weight prep (model-init time), not per call.
    w_qkv = prepare_qkv_weight(wq, wk, wv)

    out, attn = local_window_masked_head(x, w_qkv, window_size=WINDOW_SIZE)
    out = jax.block_until_ready(out)
    attn = jax.block_until_ready(attn)

    ref_out, ref_attn = _reference(x, wq, wk, wv, WINDOW_SIZE)
    assert out.shape == (B, T, H) and attn.shape == (B, T, T)
    # Tolerances account for bf16 MXU operands (f32 accumulation).
    assert jnp.allclose(attn, ref_attn, atol=3e-2, rtol=3e-2)
    assert jnp.allclose(out, ref_out, atol=3e-2, rtol=3e-2)

    print("KERNEL_OK")
</pallas_src>

<mosaic_0001>
module attributes {stable_mosaic.version = 11 : i64} {
  func.func @_attn_kernel(%arg0: i32, %arg1: memref<64x64xf32, #tpu.memory_space<vmem>>, %arg2: memref<64x48xbf16, #tpu.memory_space<vmem>>, %arg3: memref<64x64xf32, #tpu.memory_space<vmem>>, %arg4: memref<64x16xf32, #tpu.memory_space<vmem>>, %arg5: memref<64x32xf32, #tpu.memory_space<vmem>>) attributes {dimension_semantics = [#tpu.dimension_semantics<arbitrary>], iteration_bounds = array<i64: 1>, scalar_prefetch = 0 : i64, scratch_operands = 0 : i64, tpu.core_type = #tpu.core_type<tc>, window_params = [{pipeline_mode = #tpu.pipeline_mode<synchronous>, transform_indices = @transform_0, window_bounds = array<i64: 64, 64>}, {pipeline_mode = #tpu.pipeline_mode<synchronous>, transform_indices = @transform_1, window_bounds = array<i64: 64, 48>}, {pipeline_mode = #tpu.pipeline_mode<synchronous>, transform_indices = @transform_2, window_bounds = array<i64: 64, 64>}, {pipeline_mode = #tpu.pipeline_mode<synchronous>, transform_indices = @transform_3, window_bounds = array<i64: 64, 16>}, {pipeline_mode = #tpu.pipeline_mode<synchronous>, transform_indices = @transform_4, window_bounds = array<i64: 64, 32>}]} {
    %c0 = arith.constant 0 : index
    %c0_0 = arith.constant 0 : index
    %0 = vector.load %arg1[%c0, %c0_0] : memref<64x64xf32, #tpu.memory_space<vmem>>, vector<64x64xf32>
    %1 = arith.truncf %0 : vector<64x64xf32> to vector<64x64xbf16>
    %c0_1 = arith.constant 0 : index
    %c0_2 = arith.constant 0 : index
    %2 = vector.load %arg2[%c0_1, %c0_2] : memref<64x48xbf16, #tpu.memory_space<vmem>>, vector<64x48xbf16>
    %cst = arith.constant dense<0.000000e+00> : vector<64x48xf32>
    %3 = tpu.matmul %1, %2, %cst {dimension_numbers = #tpu.dot_dimension_numbers<[1], [0], [0], [1], [0, 0, 1, 1], [], []>} : vector<64x64xbf16>, vector<64x48xbf16>, vector<64x48xf32> -> vector<64x48xf32>
    %4 = arith.truncf %3 : vector<64x48xf32> to vector<64x48xbf16>
    %5 = vector.extract_strided_slice %4 {offsets = [0, 0], sizes = [64, 16], strides = [1, 1]} : vector<64x48xbf16> to vector<64x16xbf16>
    %6 = vector.extract_strided_slice %4 {offsets = [0, 16], sizes = [64, 16], strides = [1, 1]} : vector<64x48xbf16> to vector<64x16xbf16>
    %7 = vector.extract_strided_slice %4 {offsets = [0, 32], sizes = [64, 16], strides = [1, 1]} : vector<64x48xbf16> to vector<64x16xbf16>
    %cst_3 = arith.constant dense<0.000000e+00> : vector<64x64xf32>
    %8 = tpu.matmul %5, %6, %cst_3 {dimension_numbers = #tpu.dot_dimension_numbers<[1], [1], [0], [0], [0, 0, 1, 0], [], []>} : vector<64x16xbf16>, vector<64x16xbf16>, vector<64x64xf32> -> vector<64x64xf32>
    %c0_4 = arith.constant 0 : index
    %c0_5 = arith.constant 0 : index
    %9 = vector.load %arg3[%c0_4, %c0_5] : memref<64x64xf32, #tpu.memory_space<vmem>>, vector<64x64xf32>
    %10 = arith.addf %8, %9 : vector<64x64xf32>
    %cst_6 = arith.constant dense<0xFF800000> : vector<64xf32>
    %11 = vector.multi_reduction <maximumf>, %10, %cst_6 [1] : vector<64x64xf32> to vector<64xf32>
    %12 = vector.shape_cast %11 : vector<64xf32> to vector<64x1xf32>
    %13 = vector.broadcast %12 : vector<64x1xf32> to vector<64x64xf32>
    %14 = arith.subf %10, %13 : vector<64x64xf32>
    %15 = math.exp %14 : vector<64x64xf32>
    %cst_7 = arith.constant dense<0.000000e+00> : vector<64xf32>
    %16 = vector.multi_reduction <add>, %15, %cst_7 [1] : vector<64x64xf32> to vector<64xf32>
    %17 = vector.shape_cast %16 : vector<64xf32> to vector<64x1xf32>
    %18 = vector.broadcast %17 : vector<64x1xf32> to vector<64x64xf32>
    %19 = arith.divf %15, %18 : vector<64x64xf32>
    %20 = vector.extract_strided_slice %19 {offsets = [0, 0], sizes = [32, 32], strides = [1, 1]} : vector<64x64xf32> to vector<32x32xf32>
    %21 = vector.extract_strided_slice %19 {offsets = [32, 32], sizes = [32, 32], strides = [1, 1]} : vector<64x64xf32> to vector<32x32xf32>
    %22 = tpu.concatenate %20, %21 in 0 : vector<32x32xf32>, vector<32x32xf32> -> vector<64x32xf32>
    %c0_8 = arith.constant 0 : index
    %c0_9 = arith.constant 0 : index
    %23 = vector.load %arg5[%c0_8, %c0_9] : memref<64x32xf32, #tpu.memory_space<vmem>>, vector<64x32xf32>
    tpu.vector_store %arg5[%c0_8, %c0_9], %22 {strides = array<i32>} : memref<64x32xf32, #tpu.memory_space<vmem>>, vector<64x32xf32>,
    %24 = arith.truncf %19 : vector<64x64xf32> to vector<64x64xbf16>
    %cst_10 = arith.constant dense<0.000000e+00> : vector<64x16xf32>
    %25 = tpu.matmul %24, %7, %cst_10 {dimension_numbers = #tpu.dot_dimension_numbers<[1], [0], [0], [1], [0, 0, 1, 1], [], []>} : vector<64x64xbf16>, vector<64x16xbf16>, vector<64x16xf32> -> vector<64x16xf32>
    %c0_11 = arith.constant 0 : index
    %c0_12 = arith.constant 0 : index
    %26 = vector.load %arg4[%c0_11, %c0_12] : memref<64x16xf32, #tpu.memory_space<vmem>>, vector<64x16xf32>
    tpu.vector_store %arg4[%c0_11, %c0_12], %25 {strides = array<i32>} : memref<64x16xf32, #tpu.memory_space<vmem>>, vector<64x16xf32>,
    return
  }
  func.func @transform_0(%arg0: i32) -> (i32, i32) {
    %c0_i32 = arith.constant 0 : i32
    %c0_i32_0 = arith.constant 0 : i32
    %c0_i32_1 = arith.constant 0 : i32
    return %c0_i32, %c0_i32_0 : i32, i32
  }
  func.func @transform_1(%arg0: i32) -> (i32, i32) {
    %c0_i32 = arith.constant 0 : i32
    %c0_i32_0 = arith.constant 0 : i32
    %c0_i32_1 = arith.constant 0 : i32
    return %c0_i32, %c0_i32_0 : i32, i32
  }
  func.func @transform_2(%arg0: i32) -> (i32, i32) {
    %c0_i32 = arith.constant 0 : i32
    %c0_i32_0 = arith.constant 0 : i32
    %c0_i32_1 = arith.constant 0 : i32
    return %c0_i32, %c0_i32_0 : i32, i32
  }
  func.func @transform_3(%arg0: i32) -> (i32, i32) {
    %c0_i32 = arith.constant 0 : i32
    %c0_i32_0 = arith.constant 0 : i32
    %c0_i32_1 = arith.constant 0 : i32
    return %c0_i32, %c0_i32_0 : i32, i32
  }
  func.func @transform_4(%arg0: i32) -> (i32, i32) {
    %c0_i32 = arith.constant 0 : i32
    %c0_i32_0 = arith.constant 0 : i32
    %c0_i32_1 = arith.constant 0 : i32
    return %c0_i32, %c0_i32_0 : i32, i32
  }
}

</mosaic_0001>

<llo_original>
// kernel: local_window_masked_head.1
$region0: #{local_window_masked_head.1}
  #allocation0 [shape = 'u32[]', space=smem, size = 0x4, offset = 0x4, fixed_abs, tag = 'smem constant byte address 0x4 - core index']
  #allocation1 [shape = 'u32[144,128]{1,0:T(1,128)}', space=vmem, size = 0x12000, scoped, tag = 'internal scratch']
  %s0 = inlined_call_operand.vmem [shape: f32[64,64], index: 0, kind: input, shape index: {}]
  %s1 = inlined_call_operand.vmem [shape: bf16[64,48], index: 1, kind: input, shape index: {}]
  %s2 = inlined_call_operand.vmem [shape: f32[64,64], index: 2, kind: input, shape index: {}]
  %s3 = inlined_call_operand.vmem [shape: f32[64,16], index: 3, kind: output, shape index: {0}]
  %s4 = inlined_call_operand.hbm [shape: f32[64,32], index: 4, kind: output, shape index: {1}]
  %5 = xla_tuple %s3, %s4
  %s6 = sld [smem:[#allocation0]]
  $region30: #{local_window_masked_head.1} parent=0
    _
  %s8 = ssub.s32 1, %s6
  %s9 = scalar_select 0, %s8, %s6
  $region1: #{local_window_masked_head.1} parent=0
    #allocation2 [shape = 'u8[32768]{0}', space=vmem, size = 0x8000, scoped, tag = 'output window, operand 1, single buffered']
    #allocation3 [shape = 's32[1]{0}', space=sflag, size = 0x4, scoped, tag = 'scoped memory for local_window_masked_head.1']
    %10 = vsyncpa [#allocation3], 0
    // Predicated region
    $region2: #{local_window_masked_head.1} parent=1 // pred_check
      _
    $region3: #{local_window_masked_head.1} parent=1 // pred_check_branch
      %12 = sbr.rel (0) target = $region5
    $region4: #{local_window_masked_head.1} parent=1 // pred_region
      _
    $region5: #{local_window_masked_head.1} parent=1 // pred_fallthru
      _
    // Predicated region
    $region6: #{local_window_masked_head.1} parent=1 // pred_check
      _
    $region7: #{local_window_masked_head.1} parent=1 // pred_check_branch
      %14 = sbr.rel (0) target = $region9
    $region8: #{local_window_masked_head.1} parent=1 // pred_region
      _
    $region9: #{local_window_masked_head.1} parent=1 // pred_fallthru
      _
    // Predicated region
    $region10: #{local_window_masked_head.1} parent=1 // pred_check
      _
    $region11: #{local_window_masked_head.1} parent=1 // pred_check_branch
      %16 = sbr.rel (0) target = $region13
    $region12: #{local_window_masked_head.1} parent=1 // pred_region
      _
    $region13: #{local_window_masked_head.1} parent=1 // pred_fallthru
      _
    %v18 = vld [vmem:[%s0] sm:$0xff]
    %v19 = vld [vmem:[%s0 + $0x8] sm:$0xff]
    %v20 = vld [vmem:[%s0 + $0x10] sm:$0xff]
    %v21 = vld [vmem:[%s0 + $0x18] sm:$0xff]
    %v22 = vld [vmem:[%s0 + $0x20] sm:$0xff]
    %v23 = vld [vmem:[%s0 + $0x28] sm:$0xff]
    %v24 = vld [vmem:[%s0 + $0x30] sm:$0xff]
    %v25 = vld [vmem:[%s0 + $0x38] sm:$0xff]
    %v26 = vpack.c.bf16 %v19, %v18
    %v27 = vpack.c.bf16 %v21, %v20
    %v28 = vpack.c.bf16 %v23, %v22
    %v29 = vpack.c.bf16 %v25, %v24
    %v30 = vld [vmem:[%s1] sm:$0xf]
    %v31 = vld [vmem:[%s1 + $0x4] sm:$0xf]
    %v32 = vld [vmem:[%s1 + $0x8] sm:$0xf]
    %v33 = vld [vmem:[%s1 + $0xc] sm:$0xf]
    %v34 = vld [vmem:[%s1 + $0x10] sm:$0xf]
    %v35 = vld [vmem:[%s1 + $0x14] sm:$0xf]
    %v36 = vld [vmem:[%s1 + $0x18] sm:$0xf]
    %v37 = vld [vmem:[%s1 + $0x1c] sm:$0xf]
    %v46 = vunpack.c.l.b16 %v30
    %v47 = vunpack.c.l.b16 %v31
    %v48 = vunpack.c.l.b16 %v32
    %v49 = vunpack.c.l.b16 %v33
    %v50 = vunpack.c.l.b16 %v34
    %v51 = vunpack.c.l.b16 %v35
    %v52 = vunpack.c.l.b16 %v36
    %v53 = vunpack.c.l.b16 %v37
    %v54 = vpack.c.b16 %v47, %v46
    %v55 = vpack.c.b16 %v49, %v48
    %v56 = vpack.c.b16 %v51, %v50
    %v57 = vpack.c.b16 %v53, %v52
    %vm62 = vcmask 523264
    %v64 = vsel %vm62, %v26, 0
    %v67 = vsel %vm62, %v27, 0
    %v70 = vsel %vm62, %v28, 0
    %v73 = vsel %vm62, %v29, 0
    %75 = vmatprep.subr.bf16.mxu0 0
    %76 = vmatpush1.bf16.msra.mxu0 %v54
    %77 = vmatprep.subr.bf16.mxu0 0
    %78 = vmatpush1.bf16.msra.mxu0 %v55
    %79 = vmatprep.subr.bf16.mxu0 0
    %80 = vmatpush1.bf16.msra.mxu0 %v56
    %81 = vmatprep.subr.bf16.mxu0 0
    %82 = vmatpush1.bf16.msra.mxu0 %v57
    %83 = vmatprep.subr.bf16.mxu0 0
    %84 = vmatpush1.bf16.msra.mxu0 0
    %85 = vmatprep.subr.bf16.mxu0 0
    %86 = vmatpush1.bf16.msra.mxu0 0
    %87 = vmatprep.subr.bf16.mxu0 0
    %88 = vmatpush1.bf16.msra.mxu0 0
    %89 = vmatprep.subr.bf16.mxu0 0
    %90 = vmatpush1.bf16.msra.mxu0 0
    %91 = vmatprep.subr.bf16.mxu0 0
    %92 = vmatpush1.bf16.msra.mxu0 0
    %93 = vmatprep.subr.bf16.mxu0 0
    %94 = vmatpush1.bf16.msra.mxu0 0
    %95 = vmatprep.subr.bf16.mxu0 0
    %96 = vmatpush1.bf16.msra.mxu0 0
    %97 = vmatprep.subr.bf16.mxu0 0
    %98 = vmatpush1.bf16.msra.mxu0 0
    %99 = vmatprep.subr.bf16.mxu0 0
    %100 = vmatpush1.bf16.msra.mxu0 0
    %101 = vmatprep.subr.bf16.mxu0 0
    %102 = vmatpush1.bf16.msra.mxu0 0
    %103 = vmatprep.subr.bf16.mxu0 0
    %104 = vmatpush1.bf16.msra.mxu0 0
    %105 = vmatprep.subr.bf16.mxu0 0
    %106 = vmatpush1.bf16.msra.mxu0 0
    %107 = vmatprep.mubr.bf16.mxu0 0
    %108 = vmatmul.mubr.bf16.gmra.mrb[0].mxu0 %v64
    %v109 = vpop.f32.mrb[0].mxu0
    %v110 = vadd.f32 0.0, %v109
    %v111 = vpop.f32.mrb[0].mxu0
    %v112 = vpop.f32.mrb[0].mxu0
    %v113 = vadd.f32 0.0, %v112
    %v114 = vpop.f32.mrb[0].mxu0
    %115 = vmatprep.mubr.bf16.mxu0 0
    %116 = vmatmul.mubr.bf16.gmra.mrb[0].mxu0 %v67
    %v117 = vpop.f32.mrb[0].mxu0
    %v118 = vadd.f32 0.0, %v117
    %v119 = vpop.f32.mrb[0].mxu0
    %v120 = vpop.f32.mrb[0].mxu0
    %v121 = vadd.f32 0.0, %v120
    %v122 = vpop.f32.mrb[0].mxu0
    %123 = vmatprep.mubr.bf16.mxu0 0
    %124 = vmatmul.mubr.bf16.gmra.mrb[0].mxu0 %v70
    %v125 = vpop.f32.mrb[0].mxu0
    %v126 = vadd.f32 0.0, %v125
    %v127 = vpop.f32.mrb[0].mxu0
    %v128 = vpop.f32.mrb[0].mxu0
    %v129 = vadd.f32 0.0, %v128
    %v130 = vpop.f32.mrb[0].mxu0
    %131 = vmatprep.mubr.bf16.mxu0 0
    %132 = vmatmul.mubr.bf16.gmra.mrb[0].mxu0 %v73
    %v133 = vpop.f32.mrb[0].mxu0
    %v134 = vadd.f32 0.0, %v133
    %v135 = vpop.f32.mrb[0].mxu0
    %v136 = vpop.f32.mrb[0].mxu0
    %v137 = vadd.f32 0.0, %v136
    %v138 = vpop.f32.mrb[0].mxu0
    %139 = vdwg.mxu0
    %v140 = vpack.c.bf16 %v113, %v110
    %v141 = vpack.c.bf16 %v121, %v118
    %v142 = vpack.c.bf16 %v129, %v126
    %v143 = vpack.c.bf16 %v137, %v134
    %v144 = vld [vmem:[%s2] sm:$0xff]
    %v145 = vld [vmem:[%s2 + $0x8] sm:$0xff]
    %v146 = vld [vmem:[%s2 + $0x10] sm:$0xff]
    %v147 = vld [vmem:[%s2 + $0x18] sm:$0xff]
    %v148 = vld [vmem:[%s2 + $0x20] sm:$0xff]
    %v149 = vld [vmem:[%s2 + $0x28] sm:$0xff]
    %v150 = vld [vmem:[%s2 + $0x30] sm:$0xff]
    %v151 = vld [vmem:[%s2 + $0x38] sm:$0xff]
    %156 = vrot.lane.b32.xlu0 %v140, 112
    %v157 = vpop.permute.xlu0 %156
    %158 = vrot.lane.b32.xlu0 %v141, 112
    %v159 = vpop.permute.xlu0 %158
    %160 = vrot.lane.b32.xlu0 %v142, 112
    %v161 = vpop.permute.xlu0 %160
    %162 = vrot.lane.b32.xlu0 %v143, 112
    %v163 = vpop.permute.xlu0 %162
    %vm164 = vcmask 130048
    %v166 = vsel %vm164, %v140, 0
    %v169 = vsel %vm164, %v141, 0
    %v172 = vsel %vm164, %v142, 0
    %v175 = vsel %vm164, %v143, 0
    %v178 = vsel %vm164, %v157, 0
    %v181 = vsel %vm164, %v159, 0
    %v184 = vsel %vm164, %v161, 0
    %v187 = vsel %vm164, %v163, 0
    %189 = vmatprep.subr.bf16.mxu0 0
    %190 = vmatpush1.bf16.xpose.msra.mxu0 %v178
    %191 = vmatprep.subr.bf16.mxu0 0
    %192 = vmatpush1.bf16.xpose.msra.mxu0 %v181
    %193 = vmatprep.subr.bf16.mxu0 0
    %194 = vmatpush1.bf16.xpose.msra.mxu0 %v184
    %195 = vmatprep.subr.bf16.mxu0 0
    %196 = vmatpush1.bf16.xpose.msra.mxu0 %v187
    %197 = vmatprep.subr.bf16.mxu0 0
    %198 = vmatpush1.bf16.xpose.msra.mxu0 0
    %199 = vmatprep.subr.bf16.mxu0 0
    %200 = vmatpush1.bf16.xpose.msra.mxu0 0
    %201 = vmatprep.subr.bf16.mxu0 0
    %202 = vmatpush1.bf16.xpose.msra.mxu0 0
    %203 = vmatprep.subr.bf16.mxu0 0
    %204 = vmatpush1.bf16.xpose.msra.mxu0 0
    %205 = vmatprep.subr.bf16.mxu0 0
    %206 = vmatpush1.bf16.xpose.msra.mxu0 0
    %207 = vmatprep.subr.bf16.mxu0 0
    %208 = vmatpush1.bf16.xpose.msra.mxu0 0
    %209 = vmatprep.subr.bf16.mxu0 0
    %210 = vmatpush1.bf16.xpose.msra.mxu0 0
    %211 = vmatprep.subr.bf16.mxu0 0
    %212 = vmatpush1.bf16.xpose.msra.mxu0 0
    %213 = vmatprep.subr.bf16.mxu0 0
    %214 = vmatpush1.bf16.xpose.msra.mxu0 0
    %215 = vmatprep.subr.bf16.mxu0 0
    %216 = vmatpush1.bf16.xpose.msra.mxu0 0
    %217 = vmatprep.subr.bf16.mxu0 0
    %218 = vmatpush1.bf16.xpose.msra.mxu0 0
    %219 = vmatprep.subr.bf16.mxu0 0
    %220 = vmatpush1.bf16.xpose.msra.mxu0 0
    %221 = vmatprep.mubr.bf16.mxu0 0
    %222 = vmatmul.mubr.bf16.gmra.mrb[0].mxu0 %v166
    %v223 = vpop.f32.mrb[0].mxu0
    %v224 = vadd.f32 %v144, %v223
    %v225 = vpop.f32.mrb[0].mxu0
    %v226 = vpop.f32.mrb[0].mxu0
    %v227 = vadd.f32 %v145, %v226
    %v228 = vpop.f32.mrb[0].mxu0
    %229 = vmatprep.mubr.bf16.mxu0 0
    %230 = vmatmul.mubr.bf16.gmra.mrb[0].mxu0 %v169
    %v231 = vpop.f32.mrb[0].mxu0
    %v232 = vadd.f32 %v146, %v231
    %v233 = vpop.f32.mrb[0].mxu0
    %v234 = vpop.f32.mrb[0].mxu0
    %v235 = vadd.f32 %v147, %v234
    %v236 = vpop.f32.mrb[0].mxu0
    %237 = vmatprep.mubr.bf16.mxu0 0
    %238 = vmatmul.mubr.bf16.gmra.mrb[0].mxu0 %v172
    %v239 = vpop.f32.mrb[0].mxu0
    %v240 = vadd.f32 %v148, %v239
    %v241 = vpop.f32.mrb[0].mxu0
    %v242 = vpop.f32.mrb[0].mxu0
    %v243 = vadd.f32 %v149, %v242
    %v244 = vpop.f32.mrb[0].mxu0
    %245 = vmatprep.mubr.bf16.mxu0 0
    %246 = vmatmul.mubr.bf16.gmra.mrb[0].mxu0 %v175
    %v247 = vpop.f32.mrb[0].mxu0
    %v248 = vadd.f32 %v150, %v247
    %v249 = vpop.f32.mrb[0].mxu0
    %v250 = vpop.f32.mrb[0].mxu0
    %v251 = vadd.f32 %v151, %v250
    %v252 = vpop.f32.mrb[0].mxu0
    %253 = vdwg.mxu0
    %v254 = vsel %vm62, %v224, -inf
    %255 = vmax.xlane.f32.xlu0 %v254
    %v256 = vpop.xlane.xlu0 %255
    %v257 = vsel %vm62, %v227, -inf
    %258 = vmax.xlane.f32.xlu0 %v257
    %v259 = vpop.xlane.xlu0 %258
    %v260 = vsel %vm62, %v232, -inf
    %261 = vmax.xlane.f32.xlu0 %v260
    %v262 = vpop.xlane.xlu0 %261
    %v263 = vsel %vm62, %v235, -inf
    %264 = vmax.xlane.f32.xlu0 %v263
    %v265 = vpop.xlane.xlu0 %264
    %v266 = vsel %vm62, %v240, -inf
    %267 = vmax.xlane.f32.xlu0 %v266
    %v268 = vpop.xlane.xlu0 %267
    %v269 = vsel %vm62, %v243, -inf
    %270 = vmax.xlane.f32.xlu0 %v269
    %v271 = vpop.xlane.xlu0 %270
    %v272 = vsel %vm62, %v248, -inf
    %273 = vmax.xlane.f32.xlu0 %v272
    %v274 = vpop.xlane.xlu0 %273
    %v275 = vsel %vm62, %v251, -inf
    %276 = vmax.xlane.f32.xlu0 %v275
    %v277 = vpop.xlane.xlu0 %276
    %v278 = vsub.f32 %v224, %v256
    %v279 = vsub.f32 %v227, %v259
    %v280 = vsub.f32 %v232, %v262
    %v281 = vsub.f32 %v235, %v265
    %v282 = vsub.f32 %v240, %v268
    %v283 = vsub.f32 %v243, %v271
    %v284 = vsub.f32 %v248, %v274
    %v285 = vsub.f32 %v251, %v277
    %v286 = vmul.f32 %v278, 1.442695
    %v287 = vpow.pop %v286
    %v288 = vmul.f32 %v279, 1.442695
    %v289 = vpow.pop %v288
    %v290 = vmul.f32 %v280, 1.442695
    %v291 = vpow.pop %v290
    %v292 = vmul.f32 %v281, 1.442695
    %v293 = vpow.pop %v292
    %v294 = vmul.f32 %v282, 1.442695
    %v295 = vpow.pop %v294
    %v296 = vmul.f32 %v283, 1.442695
    %v297 = vpow.pop %v296
    %v298 = vmul.f32 %v284, 1.442695
    %v299 = vpow.pop %v298
    %v300 = vmul.f32 %v285, 1.442695
    %v301 = vpow.pop %v300
    %v302 = vsel %vm62, %v287, 0.0
    %303 = vadd.xlane.f32.xlu0 %v302
    %v304 = vpop.xlane.xlu0 %303
    %v305 = vsel %vm62, %v289, 0.0
    %306 = vadd.xlane.f32.xlu0 %v305
    %v307 = vpop.xlane.xlu0 %306
    %v308 = vsel %vm62, %v291, 0.0
    %309 = vadd.xlane.f32.xlu0 %v308
    %v310 = vpop.xlane.xlu0 %309
    %v311 = vsel %vm62, %v293, 0.0
    %312 = vadd.xlane.f32.xlu0 %v311
    %v313 = vpop.xlane.xlu0 %312
    %v314 = vsel %vm62, %v295, 0.0
    %315 = vadd.xlane.f32.xlu0 %v314
    %v316 = vpop.xlane.xlu0 %315
    %v317 = vsel %vm62, %v297, 0.0
    %318 = vadd.xlane.f32.xlu0 %v317
    %v319 = vpop.xlane.xlu0 %318
    %v320 = vsel %vm62, %v299, 0.0
    %321 = vadd.xlane.f32.xlu0 %v320
    %v322 = vpop.xlane.xlu0 %321
    %v323 = vsel %vm62, %v301, 0.0
    %324 = vadd.xlane.f32.xlu0 %v323
    %v325 = vpop.xlane.xlu0 %324
    %v326 = vrcp.pop %v304
    %v327 = vmul.f32 %v287, %v326
    %v328 = vrcp.pop %v307
    %v329 = vmul.f32 %v289, %v328
    %v330 = vrcp.pop %v310
    %v331 = vmul.f32 %v291, %v330
    %v332 = vrcp.pop %v313
    %v333 = vmul.f32 %v293, %v332
    %v334 = vrcp.pop %v316
    %v335 = vmul.f32 %v295, %v334
    %v336 = vrcp.pop %v319
    %v337 = vmul.f32 %v297, %v336
    %v338 = vrcp.pop %v322
    %v339 = vmul.f32 %v299, %v338
    %v340 = vrcp.pop %v325
    %v341 = vmul.f32 %v301, %v340
    %346 = vrot.lane.b32.xlu0 %v335, 96
    %v347 = vpop.permute.xlu0 %346
    %348 = vrot.lane.b32.xlu0 %v337, 96
    %v349 = vpop.permute.xlu0 %348
    %350 = vrot.lane.b32.xlu0 %v339, 96
    %v351 = vpop.permute.xlu0 %350
    %352 = vrot.lane.b32.xlu0 %v341, 96
    %v353 = vpop.permute.xlu0 %352
    %vm358 = vcmask 261120
    %359 = vst.msk [vmem:[#allocation2] sm:$0xff] %vm358, %v327
    %360 = vst.msk [vmem:[#allocation2 + $0x8] sm:$0xff] %vm358, %v329
    %361 = vst.msk [vmem:[#allocation2 + $0x10] sm:$0xff] %vm358, %v331
    %362 = vst.msk [vmem:[#allocation2 + $0x18] sm:$0xff] %vm358, %v333
    %363 = vst.msk [vmem:[#allocation2 + $0x20] sm:$0xff] %vm358, %v347
    %364 = vst.msk [vmem:[#allocation2 + $0x28] sm:$0xff] %vm358, %v349
    %365 = vst.msk [vmem:[#allocation2 + $0x30] sm:$0xff] %vm358, %v351
    %366 = vst.msk [vmem:[#allocation2 + $0x38] sm:$0xff] %vm358, %v353
    %v367 = vpack.c.bf16 %v329, %v327
    %v368 = vpack.c.bf16 %v333, %v331
    %v369 = vpack.c.bf16 %v337, %v335
    %v370 = vpack.c.bf16 %v341, %v339
    %371 = vrot.lane.b32.xlu0 %v140, 96
    %v372 = vpop.permute.xlu0 %371
    %373 = vrot.lane.b32.xlu0 %v141, 96
    %v374 = vpop.permute.xlu0 %373
    %375 = vrot.lane.b32.xlu0 %v142, 96
    %v376 = vpop.permute.xlu0 %375
    %377 = vrot.lane.b32.xlu0 %v143, 96
    %v378 = vpop.permute.xlu0 %377
    %v384 = vsel %vm62, %v367, 0
    %v387 = vsel %vm62, %v368, 0
    %v390 = vsel %vm62, %v369, 0
    %v393 = vsel %vm62, %v370, 0
    %395 = vmatprep.subr.bf16.mxu0 0
    %396 = vmatpush1.bf16.msra.mxu0 %v372
    %397 = vmatprep.subr.bf16.mxu0 0
    %398 = vmatpush1.bf16.msra.mxu0 %v374
    %399 = vmatprep.subr.bf16.mxu0 0
    %400 = vmatpush1.bf16.msra.mxu0 %v376
    %401 = vmatprep.subr.bf16.mxu0 0
    %402 = vmatpush1.bf16.msra.mxu0 %v378
    %403 = vmatprep.subr.bf16.mxu0 0
    %404 = vmatpush1.bf16.msra.mxu0 0
    %405 = vmatprep.subr.bf16.mxu0 0
    %406 = vmatpush1.bf16.msra.mxu0 0
    %407 = vmatprep.subr.bf16.mxu0 0
    %408 = vmatpush1.bf16.msra.mxu0 0
    %409 = vmatprep.subr.bf16.mxu0 0
    %410 = vmatpush1.bf16.msra.mxu0 0
    %411 = vmatprep.subr.bf16.mxu0 0
    %412 = vmatpush1.bf16.msra.mxu0 0
    %413 = vmatprep.subr.bf16.mxu0 0
    %414 = vmatpush1.bf16.msra.mxu0 0
    %415 = vmatprep.subr.bf16.mxu0 0
    %416 = vmatpush1.bf16.msra.mxu0 0
    %417 = vmatprep.subr.bf16.mxu0 0
    %418 = vmatpush1.bf16.msra.mxu0 0
    %419 = vmatprep.subr.bf16.mxu0 0
    %420 = vmatpush1.bf16.msra.mxu0 0
    %421 = vmatprep.subr.bf16.mxu0 0
    %422 = vmatpush1.bf16.msra.mxu0 0
    %423 = vmatprep.subr.bf16.mxu0 0
    %424 = vmatpush1.bf16.msra.mxu0 0
    %425 = vmatprep.subr.bf16.mxu0 0
    %426 = vmatpush1.bf16.msra.mxu0 0
    %427 = vmatprep.mubr.bf16.mxu0 0
    %428 = vmatmul.mubr.bf16.gmra.mrb[0].mxu0 %v384
    %v429 = vpop.f32.mrb[0].mxu0
    %v430 = vadd.f32 0.0, %v429
    %v431 = vpop.f32.mrb[0].mxu0
    %v432 = vpop.f32.mrb[0].mxu0
    %v433 = vadd.f32 0.0, %v432
    %v434 = vpop.f32.mrb[0].mxu0
    %435 = vmatprep.mubr.bf16.mxu0 0
    %436 = vmatmul.mubr.bf16.gmra.mrb[0].mxu0 %v387
    %v437 = vpop.f32.mrb[0].mxu0
    %v438 = vadd.f32 0.0, %v437
    %v439 = vpop.f32.mrb[0].mxu0
    %v440 = vpop.f32.mrb[0].mxu0
    %v441 = vadd.f32 0.0, %v440
    %v442 = vpop.f32.mrb[0].mxu0
    %443 = vmatprep.mubr.bf16.mxu0 0
    %444 = vmatmul.mubr.bf16.gmra.mrb[0].mxu0 %v390
    %v445 = vpop.f32.mrb[0].mxu0
    %v446 = vadd.f32 0.0, %v445
    %v447 = vpop.f32.mrb[0].mxu0
    %v448 = vpop.f32.mrb[0].mxu0
    %v449 = vadd.f32 0.0, %v448
    %v450 = vpop.f32.mrb[0].mxu0
    %451 = vmatprep.mubr.bf16.mxu0 0
    %452 = vmatmul.mubr.bf16.gmra.mrb[0].mxu0 %v393
    %v453 = vpop.f32.mrb[0].mxu0
    %v454 = vadd.f32 0.0, %v453
    %v455 = vpop.f32.mrb[0].mxu0
    %v456 = vpop.f32.mrb[0].mxu0
    %v457 = vadd.f32 0.0, %v456
    %v458 = vpop.f32.mrb[0].mxu0
    %459 = vdwg.mxu0
    %460 = vst.msk [vmem:[%s3] sm:$0xff] %vm164, %v430
    %461 = vst.msk [vmem:[%s3 + $0x8] sm:$0xff] %vm164, %v433
    %462 = vst.msk [vmem:[%s3 + $0x10] sm:$0xff] %vm164, %v438
    %463 = vst.msk [vmem:[%s3 + $0x18] sm:$0xff] %vm164, %v441
    %464 = vst.msk [vmem:[%s3 + $0x20] sm:$0xff] %vm164, %v446
    %465 = vst.msk [vmem:[%s3 + $0x28] sm:$0xff] %vm164, %v449
    %466 = vst.msk [vmem:[%s3 + $0x30] sm:$0xff] %vm164, %v454
    %467 = vst.msk [vmem:[%s3 + $0x38] sm:$0xff] %vm164, %v457
    // Predicated region
    $region14: #{local_window_masked_head.1} parent=1 // pred_check
      _
    $region15: #{local_window_masked_head.1} parent=1 // pred_check_branch
      %469 = sbr.rel (0) target = $region17
    $region16: #{local_window_masked_head.1} parent=1 // pred_region
      _
    $region17: #{local_window_masked_head.1} parent=1 // pred_fallthru
      _
    // Predicated region
    $region18: #{local_window_masked_head.1} parent=1 // pred_check
      _
    $region19: #{local_window_masked_head.1} parent=1 // pred_check_branch
      %471 = sbr.rel (0) target = $region21
    $region20: #{local_window_masked_head.1} parent=1 // pred_region
      %s473 = ssub.s32 1024, 1024
      %474 = vsyncadd [#allocation3], %s473
      %s475 = sshll.u32 [#allocation2], 4
      %s476 = int_to_ptr.vmem [resolvable:$true] %s475
      %481 = dma.vmem_to_hbm [thread:$0]  %s476, 1024, %s4, [#allocation3], 128, 128, 8
    $region21: #{local_window_masked_head.1} parent=1 // pred_fallthru
      _
    // Predicated region
    $region22: #{local_window_masked_head.1} parent=1 // pred_check
      _
    $region23: #{local_window_masked_head.1} parent=1 // pred_check_branch
      %483 = sbr.rel (0) target = $region25
    $region24: #{local_window_masked_head.1} parent=1 // pred_region
      _
    $region25: #{local_window_masked_head.1} parent=1 // pred_fallthru
      _
    // Predicated region
    $region26: #{local_window_masked_head.1} parent=1 // pred_check
      _
    $region27: #{local_window_masked_head.1} parent=1 // pred_check_branch
      %485 = sbr.rel (0) target = $region29
    $region28: #{local_window_masked_head.1} parent=1 // pred_region
      %486 = dma.done [#allocation3], 1024
    $region29: #{local_window_masked_head.1} parent=1 // pred_fallthru
      _
    %487 = vsyncpa [#allocation3], 1

</llo_original>
